<compile_context>
chip_gen: v6e
topology: v6e:2x2x1
jax: 0.10.0
libtpu: 0.0.40
codegen_flags: <defaults>
</compile_context>

<pallas_src>
import jax
import jax.numpy as jnp
from jax.experimental import pallas as pl
from jax.experimental.pallas import tpu as pltpu

K = 3  # 3x3 first conv, padding=1


def msnet_kernel(p_ref, w1_ref, b1_ref, w2_ref, b2_ref, o_ref):
    """Fused-ensemble forward for one image.

    p_ref : (K*K*Cin, H*W)    bf16  im2col'd input (spatial on lanes)
    w1_ref: (E*Cmid, K*K*Cin) bf16  all experts' 3x3-conv weights, concatenated
    b1_ref: (E*Cmid, 1)       f32
    w2_ref: (Cout, E*Cmid)    bf16  all experts' 1x1-conv weights, stacked
    b2_ref: (Cout, 1)         f32   sum of per-expert output biases
    o_ref : (Cout, H*W)       f32
    """
    hid = jnp.dot(w1_ref[...], p_ref[...], preferred_element_type=jnp.float32)
    hid = jnp.maximum(hid + b1_ref[...], 0.0)                  # bias + ReLU (f32)
    out = jnp.dot(w2_ref[...], hid.astype(jnp.bfloat16),
                  preferred_element_type=jnp.float32)
    o_ref[...] = out + b2_ref[...]


def msnet_forward(x_nchw, params):
    """Ensemble forward.  x_nchw: (N, Cin, H, W) -> (N, Cout, H, W)."""
    w1, b1, w2, b2 = params   # (E,K,K,Cin,Cmid) (E,Cmid) (E,Cmid,Cout) (E,Cout)
    E, _, _, Cin, Cmid = w1.shape
    Cout = w2.shape[-1]
    N, _, H, W = x_nchw.shape
    KKC = K * K * Cin
    EM = E * Cmid
    HW = H * W

    # ---- algebraic expert fusion (tiny; XLA fuses it under jit) -----------
    w1t = jnp.concatenate(
        [w1[e].reshape(KKC, Cmid) for e in range(E)], axis=1    # (KKC, E*Cmid)
    ).T.astype(jnp.bfloat16)                                    # (E*Cmid, KKC)
    b1f = b1.reshape(EM, 1).astype(jnp.float32)                 # (E*Cmid, 1)
    w2t = jnp.concatenate([w2[e] for e in range(E)],
                          axis=0).T.astype(jnp.bfloat16)        # (Cout, E*Cmid)
    b2f = jnp.sum(b2, axis=0).reshape(Cout, 1).astype(jnp.float32)

    # ---- im2col once, spatial on the lane axis -----------------------------
    xpad = jnp.pad(x_nchw.astype(jnp.float32),
                   ((0, 0), (0, 0), (1, 1), (1, 1)))            # (N,Cin,H+2,W+2)
    cols = []
    for dy in range(K):
        for dx in range(K):
            cols.append(xpad[:, :, dy:dy + H, dx:dx + W].reshape(N, Cin, HW))
    patches = jnp.concatenate(cols, axis=1).astype(jnp.bfloat16)  # (N, KKC, HW)

    flops = 2 * N * HW * (EM * KKC + Cout * EM)
    bytes_accessed = (patches.size * 2 + w1t.size * 2 + w2t.size * 2
                      + b1f.size * 4 + b2f.size * 4 + N * Cout * HW * 4)

    grid_spec = pltpu.PrefetchScalarGridSpec(
        num_scalar_prefetch=0,
        grid=(N,),                                       # one image per grid step
        in_specs=[
            pl.BlockSpec((None, KKC, HW), lambda n: (n, 0, 0)),   # patches
            pl.BlockSpec((EM, KKC), lambda n: (0, 0)),            # fused W1
            pl.BlockSpec((EM, 1), lambda n: (0, 0)),              # fused b1
            pl.BlockSpec((Cout, EM), lambda n: (0, 0)),           # fused W2
            pl.BlockSpec((Cout, 1), lambda n: (0, 0)),            # summed b2
        ],
        out_specs=pl.BlockSpec((None, Cout, HW), lambda n: (n, 0, 0)),
    )

    out = pl.pallas_call(
        msnet_kernel,
        out_shape=jax.ShapeDtypeStruct((N, Cout, HW), jnp.float32),
        grid_spec=grid_spec,
        compiler_params=pltpu.CompilerParams(
            dimension_semantics=("parallel",)),          # v7x: one image per TC
        cost_estimate=pl.CostEstimate(flops=flops, transcendentals=0,
                                      bytes_accessed=bytes_accessed),
    )(patches, w1t, b1f, w2t, b2f)

    return out.reshape(N, Cout, H, W)                    # already NCHW


def msnet_reference(x_nchw, params):
    """Pure-JAX per-expert reference (XLA conv) for correctness checking."""
    w1, b1, w2, b2 = params
    E = w1.shape[0]
    x = jnp.transpose(x_nchw, (0, 2, 3, 1)).astype(jnp.float32)   # NHWC
    out = 0.0
    for e in range(E):
        h = jax.lax.conv_general_dilated(
            x, w1[e], window_strides=(1, 1), padding="SAME",
            dimension_numbers=("NHWC", "HWIO", "NHWC"))
        h = jax.nn.relu(h + b1[e].reshape(1, 1, 1, -1))
        y = jnp.einsum("nhwc,cd->nhwd", h, w2[e]) + b2[e].reshape(1, 1, 1, -1)
        out = out + y
    return jnp.transpose(out, (0, 3, 1, 2))


def make_params(key, E, Cin, Cmid, Cout):
    k1, k2, k3, k4 = jax.random.split(key, 4)
    # One expert's weights, tiled across E experts: matches the shared-instance
    # semantics of nn.ModuleList([expert_base for _ in range(E)]).
    # TODO(synk): checkpoint loading (torch.load of per-node .pth) has no
    # in-script equivalent; weights are synthesized deterministically instead.
    w1 = 0.1 * jax.random.normal(k1, (K, K, Cin, Cmid), jnp.float32)
    b1 = 0.1 * jax.random.normal(k2, (Cmid,), jnp.float32)
    w2 = 0.1 * jax.random.normal(k3, (Cmid, Cout), jnp.float32)
    b2 = 0.1 * jax.random.normal(k4, (Cout,), jnp.float32)
    tile = lambda a: jnp.tile(a[None], (E,) + (1,) * a.ndim)
    return tile(w1), tile(b1), tile(w2), tile(b2)


if __name__ == "__main__":
    E = 3                      # named_nodes = ['a', 'b', 'c']
    N, Cin, H, W = 2, 4, 16, 16
    Cmid, Cout = 32, 4

    key = jax.random.PRNGKey(0)
    kx, kp = jax.random.split(key)
    x = jax.random.normal(kx, (N, Cin, H, W), jnp.float32)     # NCHW input
    params = make_params(kp, E, Cin, Cmid, Cout)

    out = jax.jit(msnet_forward)(x, params)
    out = jax.block_until_ready(out)

    ref = msnet_reference(x, params)
    assert out.shape == (N, Cout, H, W)
    # bf16 matmul operands (f32 accumulation) -> loosened tolerance vs f32 ref.
    assert jnp.allclose(out, ref, atol=5e-2, rtol=5e-2), "mismatch vs reference"

    print("KERNEL_OK")
</pallas_src>

<mosaic_0001>
module attributes {stable_mosaic.version = 11 : i64} {
  func.func @msnet_kernel(%arg0: i32, %arg1: memref<1x36x256xbf16, #tpu.memory_space<vmem>>, %arg2: memref<96x36xbf16, #tpu.memory_space<vmem>>, %arg3: memref<96x1xf32, #tpu.memory_space<vmem>>, %arg4: memref<4x96xbf16, #tpu.memory_space<vmem>>, %arg5: memref<4x1xf32, #tpu.memory_space<vmem>>, %arg6: memref<1x4x256xf32, #tpu.memory_space<vmem>>) attributes {dimension_semantics = [#tpu.dimension_semantics<parallel>], iteration_bounds = array<i64: 2>, scalar_prefetch = 0 : i64, scratch_operands = 0 : i64, tpu.core_type = #tpu.core_type<tc>, window_params = [{transform_indices = @transform_0, window_bounds = array<i64: 1, 36, 256>}, {pipeline_mode = #tpu.pipeline_mode<synchronous>, transform_indices = @transform_1, window_bounds = array<i64: 96, 36>}, {pipeline_mode = #tpu.pipeline_mode<synchronous>, transform_indices = @transform_2, window_bounds = array<i64: 96, 1>}, {pipeline_mode = #tpu.pipeline_mode<synchronous>, transform_indices = @transform_3, window_bounds = array<i64: 4, 96>}, {pipeline_mode = #tpu.pipeline_mode<synchronous>, transform_indices = @transform_4, window_bounds = array<i64: 4, 1>}, {transform_indices = @transform_5, window_bounds = array<i64: 1, 4, 256>}]} {
    %c0 = arith.constant 0 : index
    %c0_0 = arith.constant 0 : index
    %0 = vector.load %arg2[%c0, %c0_0] : memref<96x36xbf16, #tpu.memory_space<vmem>>, vector<96x36xbf16>
    %c0_1 = arith.constant 0 : index
    %c0_2 = arith.constant 0 : index
    %c0_3 = arith.constant 0 : index
    %1 = vector.load %arg1[%c0_1, %c0_2, %c0_3] : memref<1x36x256xbf16, #tpu.memory_space<vmem>>, vector<1x36x256xbf16>
    %2 = vector.shape_cast %1 : vector<1x36x256xbf16> to vector<36x256xbf16>
    %cst = arith.constant dense<0.000000e+00> : vector<96x256xf32>
    %3 = tpu.matmul %0, %2, %cst {dimension_numbers = #tpu.dot_dimension_numbers<[1], [0], [0], [1], [0, 0, 1, 1], [], []>} : vector<96x36xbf16>, vector<36x256xbf16>, vector<96x256xf32> -> vector<96x256xf32>
    %c0_4 = arith.constant 0 : index
    %c0_5 = arith.constant 0 : index
    %4 = vector.load %arg3[%c0_4, %c0_5] : memref<96x1xf32, #tpu.memory_space<vmem>>, vector<96x1xf32>
    %5 = vector.broadcast %4 : vector<96x1xf32> to vector<96x256xf32>
    %6 = arith.addf %3, %5 : vector<96x256xf32>
    %cst_6 = arith.constant 0.000000e+00 : f32
    %7 = vector.broadcast %cst_6 : f32 to vector<96x256xf32>
    %8 = arith.maximumf %6, %7 : vector<96x256xf32>
    %c0_7 = arith.constant 0 : index
    %c0_8 = arith.constant 0 : index
    %9 = vector.load %arg4[%c0_7, %c0_8] : memref<4x96xbf16, #tpu.memory_space<vmem>>, vector<4x96xbf16>
    %10 = arith.truncf %8 : vector<96x256xf32> to vector<96x256xbf16>
    %cst_9 = arith.constant dense<0.000000e+00> : vector<4x256xf32>
    %11 = tpu.matmul %9, %10, %cst_9 {dimension_numbers = #tpu.dot_dimension_numbers<[1], [0], [0], [1], [0, 0, 1, 1], [], []>} : vector<4x96xbf16>, vector<96x256xbf16>, vector<4x256xf32> -> vector<4x256xf32>
    %c0_10 = arith.constant 0 : index
    %c0_11 = arith.constant 0 : index
    %12 = vector.load %arg5[%c0_10, %c0_11] : memref<4x1xf32, #tpu.memory_space<vmem>>, vector<4x1xf32>
    %13 = vector.broadcast %12 : vector<4x1xf32> to vector<4x256xf32>
    %14 = arith.addf %11, %13 : vector<4x256xf32>
    %c0_12 = arith.constant 0 : index
    %c0_13 = arith.constant 0 : index
    %c0_14 = arith.constant 0 : index
    %15 = vector.load %arg6[%c0_12, %c0_13, %c0_14] : memref<1x4x256xf32, #tpu.memory_space<vmem>>, vector<1x4x256xf32>
    %16 = vector.shape_cast %15 : vector<1x4x256xf32> to vector<4x256xf32>
    %17 = vector.shape_cast %14 : vector<4x256xf32> to vector<1x4x256xf32>
    tpu.vector_store %arg6[%c0_12, %c0_13, %c0_14], %17 {strides = array<i32>} : memref<1x4x256xf32, #tpu.memory_space<vmem>>, vector<1x4x256xf32>,
    return
  }
  func.func @transform_0(%arg0: i32) -> (i32, i32, i32) {
    %c0_i32 = arith.constant 0 : i32
    %c0_i32_0 = arith.constant 0 : i32
    %c0_i32_1 = arith.constant 0 : i32
    return %arg0, %c0_i32, %c0_i32_0 : i32, i32, i32
  }
  func.func @transform_1(%arg0: i32) -> (i32, i32) {
    %c0_i32 = arith.constant 0 : i32
    %c0_i32_0 = arith.constant 0 : i32
    %c0_i32_1 = arith.constant 0 : i32
    return %c0_i32, %c0_i32_0 : i32, i32
  }
  func.func @transform_2(%arg0: i32) -> (i32, i32) {
    %c0_i32 = arith.constant 0 : i32
    %c0_i32_0 = arith.constant 0 : i32
    %c0_i32_1 = arith.constant 0 : i32
    return %c0_i32, %c0_i32_0 : i32, i32
  }
  func.func @transform_3(%arg0: i32) -> (i32, i32) {
    %c0_i32 = arith.constant 0 : i32
    %c0_i32_0 = arith.constant 0 : i32
    %c0_i32_1 = arith.constant 0 : i32
    return %c0_i32, %c0_i32_0 : i32, i32
  }
  func.func @transform_4(%arg0: i32) -> (i32, i32) {
    %c0_i32 = arith.constant 0 : i32
    %c0_i32_0 = arith.constant 0 : i32
    %c0_i32_1 = arith.constant 0 : i32
    return %c0_i32, %c0_i32_0 : i32, i32
  }
  func.func @transform_5(%arg0: i32) -> (i32, i32, i32) {
    %c0_i32 = arith.constant 0 : i32
    %c0_i32_0 = arith.constant 0 : i32
    %c0_i32_1 = arith.constant 0 : i32
    return %arg0, %c0_i32, %c0_i32_0 : i32, i32, i32
  }
}

</mosaic_0001>

<llo_original>
// kernel: squeeze.3
$region0: #{squeeze.3}
  %s0 = inlined_call_operand.vmem [shape: bf16[1,3,3,4,32], index: 0, kind: input, shape index: {}]
  %s1 = inlined_call_operand.vmem [shape: bf16[36,32], index: 1, kind: output, shape index: {}]
  $region1: #{squeeze.3} parent=0
    #allocation0 [shape = 'u8[20480]{0}', space=vmem, size = 0x5000, scoped, tag = 'scoped mem for output reshape']
    #allocation1 [shape = 'u8[36864]{0}', space=vmem, size = 0x9000, scoped, tag = 'scoped mem for input reshape']
    %s3 = smul.u32 2, 2
    %s4 = sshll.u32 1, %s3
    %s5 = ssub.s32 %s4, 1
    %s6 = smul.addr 2, 8
    %s7 = scalar_lea.vmem %s0, %s6
    %s8 = sshrl.u32 %s5, 1
    %s9 = sor.u32 %s5, %s8
    %s10 = sand.u32 %s9, 85
    %s11 = sshrl.u32 %s10, 1
    %s12 = sor.u32 %s10, %s11
    %s13 = sand.u32 51, %s12
    %s14 = sshrl.u32 %s13, 2
    %s15 = sor.u32 %s13, %s14
    %s16 = sand.u32 15, %s15
    %v17 = vld [vmem:[%s7] sm:%s16]
    %v18 = vunpack.c.l.bf16 %v17
    %v19 = vunpack.c.h.bf16 %v17
    %s20 = scalar_lea.vmem [#allocation1], 64
    %21 = vst [vmem:[%s20] sm:%s5] %v18
    %s22 = smul.addr 2, 7
    %s23 = scalar_lea.vmem %s0, %s22
    %s24 = sshrl.u32 %s5, 1
    %s25 = sor.u32 %s5, %s24
    %s26 = sand.u32 %s25, 85
    %s27 = sshrl.u32 %s26, 1
    %s28 = sor.u32 %s26, %s27
    %s29 = sand.u32 51, %s28
    %s30 = sshrl.u32 %s29, 2
    %s31 = sor.u32 %s29, %s30
    %s32 = sand.u32 15, %s31
    %v33 = vld [vmem:[%s23] sm:%s32]
    %v34 = vunpack.c.l.bf16 %v33
    %v35 = vunpack.c.h.bf16 %v33
    %s36 = scalar_lea.vmem [#allocation1], 56
    %37 = vst [vmem:[%s36] sm:%s5] %v34
    %s38 = smul.addr 2, 6
    %s39 = scalar_lea.vmem %s0, %s38
    %s40 = sshrl.u32 %s5, 1
    %s41 = sor.u32 %s5, %s40
    %s42 = sand.u32 %s41, 85
    %s43 = sshrl.u32 %s42, 1
    %s44 = sor.u32 %s42, %s43
    %s45 = sand.u32 51, %s44
    %s46 = sshrl.u32 %s45, 2
    %s47 = sor.u32 %s45, %s46
    %s48 = sand.u32 15, %s47
    %v49 = vld [vmem:[%s39] sm:%s48]
    %v50 = vunpack.c.l.bf16 %v49
    %v51 = vunpack.c.h.bf16 %v49
    %s52 = scalar_lea.vmem [#allocation1], 48
    %53 = vst [vmem:[%s52] sm:%s5] %v50
    %s54 = smul.addr 2, 5
    %s55 = scalar_lea.vmem %s0, %s54
    %s56 = sshrl.u32 %s5, 1
    %s57 = sor.u32 %s5, %s56
    %s58 = sand.u32 %s57, 85
    %s59 = sshrl.u32 %s58, 1
    %s60 = sor.u32 %s58, %s59
    %s61 = sand.u32 51, %s60
    %s62 = sshrl.u32 %s61, 2
    %s63 = sor.u32 %s61, %s62
    %s64 = sand.u32 15, %s63
    %v65 = vld [vmem:[%s55] sm:%s64]
    %v66 = vunpack.c.l.bf16 %v65
    %v67 = vunpack.c.h.bf16 %v65
    %s68 = scalar_lea.vmem [#allocation1], 40
    %69 = vst [vmem:[%s68] sm:%s5] %v66
    %s70 = smul.addr 2, 4
    %s71 = scalar_lea.vmem %s0, %s70
    %s72 = sshrl.u32 %s5, 1
    %s73 = sor.u32 %s5, %s72
    %s74 = sand.u32 %s73, 85
    %s75 = sshrl.u32 %s74, 1
    %s76 = sor.u32 %s74, %s75
    %s77 = sand.u32 51, %s76
    %s78 = sshrl.u32 %s77, 2
    %s79 = sor.u32 %s77, %s78
    %s80 = sand.u32 15, %s79
    %v81 = vld [vmem:[%s71] sm:%s80]
    %v82 = vunpack.c.l.bf16 %v81
    %v83 = vunpack.c.h.bf16 %v81
    %s84 = scalar_lea.vmem [#allocation1], 32
    %85 = vst [vmem:[%s84] sm:%s5] %v82
    %s86 = smul.addr 2, 3
    %s87 = scalar_lea.vmem %s0, %s86
    %s88 = sshrl.u32 %s5, 1
    %s89 = sor.u32 %s5, %s88
    %s90 = sand.u32 %s89, 85
    %s91 = sshrl.u32 %s90, 1
    %s92 = sor.u32 %s90, %s91
    %s93 = sand.u32 51, %s92
    %s94 = sshrl.u32 %s93, 2
    %s95 = sor.u32 %s93, %s94
    %s96 = sand.u32 15, %s95
    %v97 = vld [vmem:[%s87] sm:%s96]
    %v98 = vunpack.c.l.bf16 %v97
    %v99 = vunpack.c.h.bf16 %v97
    %s100 = scalar_lea.vmem [#allocation1], 24
    %101 = vst [vmem:[%s100] sm:%s5] %v98
    %s102 = smul.addr 2, 2
    %s103 = scalar_lea.vmem %s0, %s102
    %s104 = sshrl.u32 %s5, 1
    %s105 = sor.u32 %s5, %s104
    %s106 = sand.u32 %s105, 85
    %s107 = sshrl.u32 %s106, 1
    %s108 = sor.u32 %s106, %s107
    %s109 = sand.u32 51, %s108
    %s110 = sshrl.u32 %s109, 2
    %s111 = sor.u32 %s109, %s110
    %s112 = sand.u32 15, %s111
    %v113 = vld [vmem:[%s103] sm:%s112]
    %v114 = vunpack.c.l.bf16 %v113
    %v115 = vunpack.c.h.bf16 %v113
    %s116 = scalar_lea.vmem [#allocation1], 16
    %117 = vst [vmem:[%s116] sm:%s5] %v114
    %s118 = scalar_lea.vmem %s0, 2
    %s119 = sshrl.u32 %s5, 1
    %s120 = sor.u32 %s5, %s119
    %s121 = sand.u32 %s120, 85
    %s122 = sshrl.u32 %s121, 1
    %s123 = sor.u32 %s121, %s122
    %s124 = sand.u32 51, %s123
    %s125 = sshrl.u32 %s124, 2
    %s126 = sor.u32 %s124, %s125
    %s127 = sand.u32 15, %s126
    %v128 = vld [vmem:[%s118] sm:%s127]
    %v129 = vunpack.c.l.bf16 %v128
    %v130 = vunpack.c.h.bf16 %v128
    %s131 = scalar_lea.vmem [#allocation1], 8
    %132 = vst [vmem:[%s131] sm:%s5] %v129
    %s133 = sshrl.u32 %s5, 1
    %s134 = sor.u32 %s5, %s133
    %s135 = sand.u32 %s134, 85
    %s136 = sshrl.u32 %s135, 1
    %s137 = sor.u32 %s135, %s136
    %s138 = sand.u32 51, %s137
    %s139 = sshrl.u32 %s138, 2
    %s140 = sor.u32 %s138, %s139
    %s141 = sand.u32 15, %s140
    %v142 = vld [vmem:[%s0] sm:%s141]
    %v143 = vunpack.c.l.bf16 %v142
    %v144 = vunpack.c.h.bf16 %v142
    %145 = vst [vmem:[#allocation1] sm:%s5] %v143
    %v146 = vld [vmem:[#allocation1] sm:$0xf]
    %vm147 = vcmask 261120
    %148 = vst.msk [vmem:[#allocation0] sm:$0xf] %vm147, %v146
    %s149 = scalar_lea.vmem [#allocation1], 8
    %v150 = vld [vmem:[%s149] sm:$0xf]
    %vm151 = vcmask 261120
    %s152 = scalar_lea.vmem [#allocation0], 4
    %153 = vst.msk [vmem:[%s152] sm:$0xf] %vm151, %v150
    %s154 = scalar_lea.vmem [#allocation1], 16
    %v155 = vld [vmem:[%s154] sm:$0xf]
    %vm156 = vcmask 261120
    %s157 = scalar_lea.vmem [#allocation0], 8
    %158 = vst.msk [vmem:[%s157] sm:$0xf] %vm156, %v155
    %s159 = scalar_lea.vmem [#allocation1], 24
    %v160 = vld [vmem:[%s159] sm:$0xf]
    %vm161 = vcmask 261120
    %s162 = scalar_lea.vmem [#allocation0], 12
    %163 = vst.msk [vmem:[%s162] sm:$0xf] %vm161, %v160
    %s164 = scalar_lea.vmem [#allocation1], 32
    %v165 = vld [vmem:[%s164] sm:$0xf]
    %vm166 = vcmask 261120
    %s167 = scalar_lea.vmem [#allocation0], 16
    %168 = vst.msk [vmem:[%s167] sm:$0xf] %vm166, %v165
    %s169 = scalar_lea.vmem [#allocation1], 40
    %v170 = vld [vmem:[%s169] sm:$0xf]
    %vm171 = vcmask 261120
    %s172 = scalar_lea.vmem [#allocation0], 20
    %173 = vst.msk [vmem:[%s172] sm:$0xf] %vm171, %v170
    %s174 = scalar_lea.vmem [#allocation1], 48
    %v175 = vld [vmem:[%s174] sm:$0xf]
    %vm176 = vcmask 261120
    %s177 = scalar_lea.vmem [#allocation0], 24
    %178 = vst.msk [vmem:[%s177] sm:$0xf] %vm176, %v175
    %s179 = scalar_lea.vmem [#allocation1], 56
    %v180 = vld [vmem:[%s179] sm:$0xf]
    %vm181 = vcmask 261120
    %s182 = scalar_lea.vmem [#allocation0], 28
    %183 = vst.msk [vmem:[%s182] sm:$0xf] %vm181, %v180
    %s184 = scalar_lea.vmem [#allocation1], 64
    %v185 = vld [vmem:[%s184] sm:$0xf]
    %vm186 = vcmask 261120
    %s187 = scalar_lea.vmem [#allocation0], 32
    %188 = vst.msk [vmem:[%s187] sm:$0xf] %vm186, %v185
    %s190 = smul.u32 4, 2
    %s191 = sshll.u32 1, %s190
    %s192 = ssub.s32 %s191, 1
    %s193 = sshrl.u32 %s190, 1
    %v194 = vld [vmem:[#allocation0] sm:%s192]
    %v195 = vpack.c.bf16 0.0, %v194
    %s196 = sshll.u32 1, %s193
    %s197 = ssub.s32 %s196, 1
    %198 = vst [vmem:[%s1] sm:%s197] %v195
    %s199 = scalar_lea.vmem [#allocation0], 8
    %v200 = vld [vmem:[%s199] sm:%s192]
    %v201 = vpack.c.bf16 0.0, %v200
    %s202 = sshll.u32 1, %s193
    %s203 = ssub.s32 %s202, 1
    %s204 = scalar_lea.vmem %s1, 4
    %205 = vst [vmem:[%s204] sm:%s203] %v201
    %s206 = scalar_lea.vmem [#allocation0], 16
    %v207 = vld [vmem:[%s206] sm:%s192]
    %v208 = vpack.c.bf16 0.0, %v207
    %s209 = sshll.u32 1, %s193
    %s210 = ssub.s32 %s209, 1
    %s211 = smul.addr 4, 2
    %s212 = scalar_lea.vmem %s1, %s211
    %213 = vst [vmem:[%s212] sm:%s210] %v208
    %s214 = scalar_lea.vmem [#allocation0], 24
    %v215 = vld [vmem:[%s214] sm:%s192]
    %v216 = vpack.c.bf16 0.0, %v215
    %s217 = sshll.u32 1, %s193
    %s218 = ssub.s32 %s217, 1
    %s219 = smul.addr 4, 3
    %s220 = scalar_lea.vmem %s1, %s219
    %221 = vst [vmem:[%s220] sm:%s218] %v216
    %s222 = scalar_lea.vmem [#allocation0], 32
    %v223 = vld [vmem:[%s222] sm:%s192]
    %v224 = vpack.c.bf16 0.0, %v223
    %s225 = sshll.u32 1, %s193
    %s226 = ssub.s32 %s225, 1
    %s227 = smul.addr 4, 4
    %s228 = scalar_lea.vmem %s1, %s227
    %229 = vst [vmem:[%s228] sm:%s226] %v224

// kernel: msnet_forward.1
$region0: #{msnet_forward.1}
  #allocation0 [shape = 'u32[]', space=smem, size = 0x4, offset = 0x4, fixed_abs, tag = 'smem constant byte address 0x4 - core index']
  #allocation1 [shape = 'u32[144,128]{1,0:T(1,128)}', space=vmem, size = 0x12000, scoped, tag = 'internal scratch']
  %s0 = inlined_call_operand.vmem [shape: bf16[2,36,256], index: 0, kind: input, shape index: {}]
  %s1 = inlined_call_operand.vmem [shape: bf16[96,36], index: 1, kind: input, shape index: {}]
  %s2 = inlined_call_operand.vmem [shape: f32[96,1], index: 2, kind: input, shape index: {}]
  %s3 = inlined_call_operand.vmem [shape: bf16[4,96], index: 3, kind: input, shape index: {}]
  %s4 = inlined_call_operand.vmem [shape: f32[4,1], index: 4, kind: input, shape index: {}]
  %s5 = inlined_call_operand.vmem [shape: f32[2,4,256], index: 5, kind: output, shape index: {}]
  %s6 = sld [smem:[#allocation0]]
  $region53: #{msnet_forward.1} parent=0
    _
  %s8 = ssub.s32 1, %s6
  %s9 = scalar_select 0, %s8, %s6
  loop: start=0, step=1, limit=4
  $region2: #{msnet_forward.1} parent=0 // loop_pre_header
    _
  $region3: #{msnet_forward.1} parent=0 // loop_header
    %s11 = sphi 0, %s15
    %p12 = scmp.ge.s32.totalorder %s11, 4
    %s21 = sphi 0, %s23
    %s24 = sphi 0, %s21
    %s25 = sphi 0, %s24
    %s41 = sphi 0, %s25
    %s45 = sphi 0, %s45
    %s47 = sphi 0, %s45
    %s48 = sphi 0, %s47
    %s62 = sphi 0, %s48
    %s66 = sphi 0, %s66
    %s68 = sphi 0, %s66
    %s69 = sphi 0, %s68
    %s83 = sphi 0, %s69
    %s87 = sphi 0, %s87
    %s89 = sphi 0, %s87
    %s90 = sphi 0, %s89
    %s104 = sphi 0, %s90
    %s108 = sphi 0, %s108
    %s110 = sphi 0, %s108
    %s111 = sphi 0, %s110
    %s125 = sphi 0, %s111
    %s131 = sphi 0, %s133
    %s134 = sphi 0, %s131
    %s135 = sphi 0, %s134
    %s151 = sphi 0, %s135
  $region4: #{msnet_forward.1} parent=0 // loop_header_branch
    %14 = sbr.rel (%p12) target = $region8
  $region5: #{msnet_forward.1} parent=0 // loop_body
    %s16 = ssub.s32 %s11, 1
    %s17 = ssub.s32 %s11, 2
    %s18 = sadd.s32 %s11, 1
    %s19 = ssub.s32 %s11, %s18
    %p20 = scmp.eq.s32.totalorder %s19, 0
    %s22 = sadd.s32 %s21, 1
    %s23 = scalar_select %p20, %s21, %s22
    %p26 = pneg %p20
    %p27 = scmp.eq.s32.totalorder %s11, 1
    %p28 = por %p26, %p27
    %p29 = scmp.ne.s32.totalorder %s21, %s24
    %p30 = scmp.eq.s32.totalorder %s11, 0
    %p31 = por %p29, %p30
    %p32 = scmp.ne.s32.totalorder %s21, %s24
    %p33 = scmp.eq.s32.totalorder %s16, 1
    %p34 = por %p32, %p33
    %p35 = scmp.ne.s32.totalorder %s24, %s25
    %p36 = scmp.eq.s32.totalorder %s16, 0
    %p37 = por %p35, %p36
    %p38 = scmp.ne.s32.totalorder %s24, %s25
    %p39 = scmp.eq.s32.totalorder %s17, 1
    %p40 = por %p38, %p39
    %p42 = scmp.ne.s32.totalorder %s25, %s41
    %p43 = scmp.eq.s32.totalorder %s17, 0
    %p44 = por %p42, %p43
    %s46 = sadd.s32 %s45, 1
    %p49 = scmp.eq.s32.totalorder %s11, 1
    %p50 = scmp.ne.s32.totalorder %s45, %s47
    %p51 = scmp.eq.s32.totalorder %s11, 0
    %p52 = por %p50, %p51
    %p53 = scmp.ne.s32.totalorder %s45, %s47
    %p54 = scmp.eq.s32.totalorder %s16, 1
    %p55 = por %p53, %p54
    %p56 = scmp.ne.s32.totalorder %s47, %s48
    %p57 = scmp.eq.s32.totalorder %s16, 0
    %p58 = por %p56, %p57
    %p59 = scmp.ne.s32.totalorder %s47, %s48
    %p60 = scmp.eq.s32.totalorder %s17, 1
    %p61 = por %p59, %p60
    %p63 = scmp.ne.s32.totalorder %s48, %s62
    %p64 = scmp.eq.s32.totalorder %s17, 0
    %p65 = por %p63, %p64
    %s67 = sadd.s32 %s66, 1
    %p70 = scmp.eq.s32.totalorder %s11, 1
    %p71 = scmp.ne.s32.totalorder %s66, %s68
    %p72 = scmp.eq.s32.totalorder %s11, 0
    %p73 = por %p71, %p72
    %p74 = scmp.ne.s32.totalorder %s66, %s68
    %p75 = scmp.eq.s32.totalorder %s16, 1
    %p76 = por %p74, %p75
    %p77 = scmp.ne.s32.totalorder %s68, %s69
    %p78 = scmp.eq.s32.totalorder %s16, 0
    %p79 = por %p77, %p78
    %p80 = scmp.ne.s32.totalorder %s68, %s69
    %p81 = scmp.eq.s32.totalorder %s17, 1
    %p82 = por %p80, %p81
    %p84 = scmp.ne.s32.totalorder %s69, %s83
    %p85 = scmp.eq.s32.totalorder %s17, 0
    %p86 = por %p84, %p85
    %s88 = sadd.s32 %s87, 1
    %p91 = scmp.eq.s32.totalorder %s11, 1
    %p92 = scmp.ne.s32.totalorder %s87, %s89
    %p93 = scmp.eq.s32.totalorder %s11, 0
    %p94 = por %p92, %p93
    %p95 = scmp.ne.s32.totalorder %s87, %s89
    %p96 = scmp.eq.s32.totalorder %s16, 1
    %p97 = por %p95, %p96
    %p98 = scmp.ne.s32.totalorder %s89, %s90
    %p99 = scmp.eq.s32.totalorder %s16, 0
    %p100 = por %p98, %p99
    %p101 = scmp.ne.s32.totalorder %s89, %s90
    %p102 = scmp.eq.s32.totalorder %s17, 1
    %p103 = por %p101, %p102
    %p105 = scmp.ne.s32.totalorder %s90, %s104
    %p106 = scmp.eq.s32.totalorder %s17, 0
    %p107 = por %p105, %p106
    %s109 = sadd.s32 %s108, 1
    %p112 = scmp.eq.s32.totalorder %s11, 1
    %p113 = scmp.ne.s32.totalorder %s108, %s110
    %p114 = scmp.eq.s32.totalorder %s11, 0
    %p115 = por %p113, %p114
    %p116 = scmp.ne.s32.totalorder %s108, %s110
    %p117 = scmp.eq.s32.totalorder %s16, 1
    %p118 = por %p116, %p117
    %p119 = scmp.ne.s32.totalorder %s110, %s111
    %p120 = scmp.eq.s32.totalorder %s16, 0
    %p121 = por %p119, %p120
    %p122 = scmp.ne.s32.totalorder %s110, %s111
    %p123 = scmp.eq.s32.totalorder %s17, 1
    %p124 = por %p122, %p123
    %p126 = scmp.ne.s32.totalorder %s111, %s125
    %p127 = scmp.eq.s32.totalorder %s17, 0
    %p128 = por %p126, %p127
    %s129 = ssub.s32 %s11, %s18
    %p130 = scmp.eq.s32.totalorder %s129, 0
    %s132 = sadd.s32 %s131, 1
    %s133 = scalar_select %p130, %s131, %s132
    %p136 = pneg %p130
    %p137 = scmp.eq.s32.totalorder %s11, 1
    %p138 = por %p136, %p137
    %p139 = scmp.ne.s32.totalorder %s131, %s134
    %p140 = scmp.eq.s32.totalorder %s11, 0
    %p141 = por %p139, %p140
    %p142 = scmp.ne.s32.totalorder %s131, %s134
    %p143 = scmp.eq.s32.totalorder %s16, 1
    %p144 = por %p142, %p143
    %p145 = scmp.ne.s32.totalorder %s134, %s135
    %p146 = scmp.eq.s32.totalorder %s16, 0
    %p147 = por %p145, %p146
    %p148 = scmp.ne.s32.totalorder %s134, %s135
    %p149 = scmp.eq.s32.totalorder %s17, 1
    %p150 = por %p148, %p149
    %p152 = scmp.ne.s32.totalorder %s135, %s151
    %p153 = scmp.eq.s32.totalorder %s17, 0
    %p154 = por %p152, %p153
    %p155 = scmp.le.s32.totalorder 1, %s11
    %p156 = scmp.lt.s32.totalorder %s11, 3
    %p157 = pnand %p155, %p156
    %p158 = pneg %p157
    // Predicated region
    $region9: #{msnet_forward.1} parent=5 // pred_check
      _
    $region10: #{msnet_forward.1} parent=5 // pred_check_branch
      %160 = sbr.rel (%p157) target = $region12
    $region11: #{msnet_forward.1} parent=5 // pred_region
      %s161 = ssub.s32 %s11, 1
      // Predicated region
      $region13: #{msnet_forward.1} parent=11 // pred_check
        %p162 = pneg %p58
      $region14: #{msnet_forward.1} parent=11 // pred_check_branch
        %164 = sbr.rel (%p162) target = $region16
      $region15: #{msnet_forward.1} parent=11 // pred_region
        _
      $region16: #{msnet_forward.1} parent=11 // pred_fallthru
        _
      // Predicated region
      $region17: #{msnet_forward.1} parent=11 // pred_check
        %p165 = pneg %p79
      $region18: #{msnet_forward.1} parent=11 // pred_check_branch
        %167 = sbr.rel (%p165) target = $region20
      $region19: #{msnet_forward.1} parent=11 // pred_region
        _
      $region20: #{msnet_forward.1} parent=11 // pred_fallthru
        _
      // Predicated region
      $region21: #{msnet_forward.1} parent=11 // pred_check
        %p168 = pneg %p100
      $region22: #{msnet_forward.1} parent=11 // pred_check_branch
        %170 = sbr.rel (%p168) target = $region24
      $region23: #{msnet_forward.1} parent=11 // pred_region
        _
      $region24: #{msnet_forward.1} parent=11 // pred_fallthru
        _
      // Predicated region
      $region25: #{msnet_forward.1} parent=11 // pred_check
        %p171 = pneg %p121
      $region26: #{msnet_forward.1} parent=11 // pred_check_branch
        %173 = sbr.rel (%p171) target = $region28
      $region27: #{msnet_forward.1} parent=11 // pred_region
        _
      $region28: #{msnet_forward.1} parent=11 // pred_fallthru
        _
    $region12: #{msnet_forward.1} parent=5 // pred_fallthru
      _
    %p174 = scmp.lt.s32.totalorder %s11, 2
    // Predicated region
    $region29: #{msnet_forward.1} parent=5 // pred_check
      %p175 = pneg %p174
    $region30: #{msnet_forward.1} parent=5 // pred_check_branch
      %177 = sbr.rel (%p175) target = $region32
    $region31: #{msnet_forward.1} parent=5 // pred_region
      // Predicated region
      $region33: #{msnet_forward.1} parent=31 // pred_check
        %p178 = pneg %p31
      $region34: #{msnet_forward.1} parent=31 // pred_check_branch
        %180 = sbr.rel (%p178) target = $region36
      $region35: #{msnet_forward.1} parent=31 // pred_region
        %p181 = scmp.lt.s32.totalorder %s11, 1
        %s182 = scalar_select %p181, %s11, 1
        %s183 = smul.addr %s182, 10
        %s184 = smul.addr %s183, 4
        %s185 = scalar_lea.vmem %s0, %s184
      $region36: #{msnet_forward.1} parent=31 // pred_fallthru
        _
    $region32: #{msnet_forward.1} parent=5 // pred_fallthru
      _
    %p186 = scmp.le.s32.totalorder 1, %s11
    %p187 = scmp.lt.s32.totalorder %s11, 3
    %p188 = pnand %p186, %p187
    %p189 = pneg %p188
    // Predicated region
    $region37: #{msnet_forward.1} parent=5 // pred_check
      _
    $region38: #{msnet_forward.1} parent=5 // pred_check_branch
      %191 = sbr.rel (%p188) target = $region40
    $region39: #{msnet_forward.1} parent=5 // pred_region
      %s192 = ssub.s32 %s11, 1
      %p193 = scmp.lt.s32.totalorder %s16, 1
      %s194 = scalar_select %p193, %s16, 1
      %s195 = smul.addr %s194, 10
      %s196 = smul.addr %s195, 4
      %s197 = scalar_lea.vmem %s0, %s196
      %p198 = pneg %p37
      %p199 = pneg %p34
      %p200 = pneg %p58
      %p201 = pneg %p55
      %p202 = pneg %p79
      %p203 = pneg %p76
      %p204 = pneg %p100
      %p205 = pneg %p97
      %p206 = pneg %p121
      %p207 = pneg %p118
      %p208 = pneg %p147
      %p209 = pneg %p144
      %p210 = scmp.lt.s32.totalorder %s16, 1
      %s211 = scalar_select %p210, %s16, 1
      %s212 = smul.addr %s211, 2
      %s213 = smul.addr %s212, 4
      %s214 = scalar_lea.vmem %s5, %s213
      %p215 = scmp.lt.s32.totalorder %s16, 1
      %s216 = scalar_select %p215, %s16, 1
      %s217 = smul.addr %s216, 10
      %s218 = smul.addr %s217, 4
      %s219 = scalar_lea.vmem %s0, %s218
      %p220 = scmp.lt.s32.totalorder %s16, 1
      %s221 = scalar_select %p220, %s16, 1
      %s222 = smul.addr %s221, 2
      %s223 = smul.addr %s222, 4
      %s224 = scalar_lea.vmem %s5, %s223
      %v226 = vld [vmem:[%s1] sm:$0xf]
      %v227 = vld [vmem:[%s1 + $0x4] sm:$0xf]
      %v228 = vld [vmem:[%s1 + $0x8] sm:$0xf]
      %v229 = vld [vmem:[%s1 + $0xc] sm:$0xf]
      %v230 = vld [vmem:[%s1 + $0x10] sm:$0xf]
      %v231 = vld [vmem:[%s1 + $0x14] sm:$0xf]
      %v232 = vld [vmem:[%s1 + $0x18] sm:$0xf]
      %v233 = vld [vmem:[%s1 + $0x1c] sm:$0xf]
      %v234 = vld [vmem:[%s1 + $0x20] sm:$0xf]
      %v235 = vld [vmem:[%s1 + $0x24] sm:$0xf]
      %v236 = vld [vmem:[%s1 + $0x28] sm:$0xf]
      %v237 = vld [vmem:[%s1 + $0x2c] sm:$0xf]
      %v238 = vld [vmem:[%s219] sm:$0xff]
      %v239 = vld [vmem:[%s219 + $0x8] sm:$0xff]
      %v240 = vld [vmem:[%s219 + $0x10] sm:$0xff]
      %v241 = vld [vmem:[%s219 + $0x18] sm:$0xff]
      %v242 = vld [vmem:[%s219 + $0x20] sm:$0x33]
      %v243 = vld [vmem:[%s2] sm:$0xff]
      %v244 = vld [vmem:[%s2 + $0x8] sm:$0xff]
      %v245 = vld [vmem:[%s2 + $0x10] sm:$0xff]
      %v246 = vld [vmem:[%s2 + $0x18] sm:$0xff]
      %v247 = vld [vmem:[%s2 + $0x20] sm:$0xff]
      %v248 = vld [vmem:[%s2 + $0x28] sm:$0xff]
      %v249 = vld [vmem:[%s2 + $0x30] sm:$0xff]
      %v250 = vld [vmem:[%s2 + $0x38] sm:$0xff]
      %v251 = vld [vmem:[%s2 + $0x40] sm:$0xff]
      %v252 = vld [vmem:[%s2 + $0x48] sm:$0xff]
      %v253 = vld [vmem:[%s2 + $0x50] sm:$0xff]
      %v254 = vld [vmem:[%s2 + $0x58] sm:$0xff]
      %256 = vset.pattern.permute.xlu0 0
      %257 = vperm.xlu0 %256, %v243
      %v258 = vpop.permute.xlu0 %257
      %261 = vset.pattern.permute.xlu0 0
      %262 = vperm.xlu0 %261, %v244
      %v263 = vpop.permute.xlu0 %262
      %266 = vset.pattern.permute.xlu0 0
      %267 = vperm.xlu0 %266, %v245
      %v268 = vpop.permute.xlu0 %267
      %271 = vset.pattern.permute.xlu0 0
      %272 = vperm.xlu0 %271, %v246
      %v273 = vpop.permute.xlu0 %272
      %276 = vset.pattern.permute.xlu0 0
      %277 = vperm.xlu0 %276, %v247
      %v278 = vpop.permute.xlu0 %277
      %281 = vset.pattern.permute.xlu0 0
      %282 = vperm.xlu0 %281, %v248
      %v283 = vpop.permute.xlu0 %282
      %286 = vset.pattern.permute.xlu0 0
      %287 = vperm.xlu0 %286, %v249
      %v288 = vpop.permute.xlu0 %287
      %291 = vset.pattern.permute.xlu0 0
      %292 = vperm.xlu0 %291, %v250
      %v293 = vpop.permute.xlu0 %292
      %296 = vset.pattern.permute.xlu0 0
      %297 = vperm.xlu0 %296, %v251
      %v298 = vpop.permute.xlu0 %297
      %301 = vset.pattern.permute.xlu0 0
      %302 = vperm.xlu0 %301, %v252
      %v303 = vpop.permute.xlu0 %302
      %306 = vset.pattern.permute.xlu0 0
      %307 = vperm.xlu0 %306, %v253
      %v308 = vpop.permute.xlu0 %307
      %311 = vset.pattern.permute.xlu0 0
      %312 = vperm.xlu0 %311, %v254
      %v313 = vpop.permute.xlu0 %312
      %v327 = vunpack.c.l.b16 %v226
      %v328 = vunpack.c.l.b16 %v227
      %v329 = vunpack.c.l.b16 %v228
      %v330 = vunpack.c.l.b16 %v229
      %v331 = vunpack.c.l.b16 %v230
      %v332 = vunpack.c.l.b16 %v231
      %v333 = vunpack.c.l.b16 %v232
      %v334 = vunpack.c.l.b16 %v233
      %v335 = vunpack.c.l.b16 %v234
      %v336 = vunpack.c.l.b16 %v235
      %v337 = vunpack.c.l.b16 %v236
      %v338 = vunpack.c.l.b16 %v237
      %v339 = vpack.c.b16 %v328, %v327
      %v340 = vpack.c.b16 %v330, %v329
      %v341 = vpack.c.b16 %v332, %v331
      %v342 = vpack.c.b16 %v334, %v333
      %v343 = vpack.c.b16 %v336, %v335
      %v344 = vpack.c.b16 %v338, %v337
      %v350 = vunpack.c.l.b16 %v238
      %v351 = vunpack.c.h.b16 %v238
      %v352 = vunpack.c.l.b16 %v239
      %v353 = vunpack.c.h.b16 %v239
      %v354 = vunpack.c.l.b16 %v240
      %v355 = vunpack.c.h.b16 %v240
      %v356 = vunpack.c.l.b16 %v241
      %v357 = vunpack.c.h.b16 %v241
      %v358 = vunpack.c.l.b16 %v242
      %v359 = vunpack.c.h.b16 %v242
      %v360 = vpack.c.b16 %v352, %v350
      %v361 = vpack.c.b16 %v353, %v351
      %v362 = vpack.c.b16 %v356, %v354
      %v363 = vpack.c.b16 %v357, %v355
      %v364 = vpack.c.b16 %v358, %v358
      %v365 = vpack.c.b16 %v359, %v359
      %vm370 = vcmask 293888
      %v372 = vsel %vm370, %v339, 0
      %v375 = vsel %vm370, %v340, 0
      %v378 = vsel %vm370, %v341, 0
      %v381 = vsel %vm370, %v342, 0
      %v384 = vsel %vm370, %v343, 0
      %v387 = vsel %vm370, %v344, 0
      %vm389 = vcmask 1041408
      %v391 = vsel %vm389, %v364, 0
      %v394 = vsel %vm389, %v365, 0
      %396 = vmatprep.subr.bf16.mxu0 0
      %397 = vmatpush1.bf16.msra.mxu0 0
      %398 = vmatprep.subr.bf16.mxu0 0
      %399 = vmatpush1.bf16.msra.mxu0 0
      %400 = vmatprep.subr.bf16.mxu0 0
      %401 = vmatpush1.bf16.msra.mxu0 0
      %402 = vmatprep.subr.bf16.mxu0 0
      %403 = vmatpush1.bf16.msra.mxu0 0
      %404 = vmatprep.subr.bf16.mxu0 0
      %405 = vmatpush1.bf16.msra.mxu0 0
      %406 = vmatprep.subr.bf16.mxu0 %v394
      %407 = vmatpush1.bf16.msra.mxu0 %v391
      %408 = vmatprep.subr.bf16.mxu0 %v363
      %409 = vmatpush1.bf16.msra.mxu0 %v362
      %410 = vmatprep.subr.bf16.mxu0 %v361
      %411 = vmatpush1.bf16.msra.mxu0 %v360
      %412 = vmatprep.subr.bf16.mxu0 0
      %413 = vmatpush2.bf16.msra.mxu0 0
      %414 = vmatprep.subr.bf16.mxu0 0
      %415 = vmatpush2.bf16.msra.mxu0 0
      %416 = vmatprep.subr.bf16.mxu0 0
      %417 = vmatpush2.bf16.msra.mxu0 0
      %418 = vmatprep.subr.bf16.mxu0 0
      %419 = vmatpush2.bf16.msra.mxu0 0
      %420 = vmatprep.subr.bf16.mxu0 0
      %421 = vmatpush2.bf16.msra.mxu0 0
      %422 = vmatprep.subr.bf16.mxu0 0
      %423 = vmatpush2.bf16.msra.mxu0 0
      %424 = vmatprep.subr.bf16.mxu0 0
      %425 = vmatpush2.bf16.msra.mxu0 0
      %426 = vmatprep.subr.bf16.mxu0 0
      %427 = vmatpush2.bf16.msra.mxu0 0
      %428 = vmatprep.mubr.bf16.mxu0 0
      %429 = vmatmul.mubr.bf16.gmra.mxu0 %v372
      %v430 = vpop.f32.mrf.mxu0
      %v431 = vadd.f32 %v258, %v430
      %v432 = vpop.f32.mrf.mxu0
      %v433 = vadd.f32 %v258, %v432
      %v434 = vpop.f32.mrf.mxu0
      %v435 = vadd.f32 %v263, %v434
      %v436 = vpop.f32.mrf.mxu0
      %v437 = vadd.f32 %v263, %v436
      %438 = vmatprep.mubr.bf16.mxu0 0
      %439 = vmatmul.mubr.bf16.gmra.mxu0 %v375
      %v440 = vpop.f32.mrf.mxu0
      %v441 = vadd.f32 %v268, %v440
      %v442 = vpop.f32.mrf.mxu0
      %v443 = vadd.f32 %v268, %v442
      %v444 = vpop.f32.mrf.mxu0
      %v445 = vadd.f32 %v273, %v444
      %v446 = vpop.f32.mrf.mxu0
      %v447 = vadd.f32 %v273, %v446
      %448 = vmatprep.mubr.bf16.mxu0 0
      %449 = vmatmul.mubr.bf16.gmra.mxu0 %v378
      %v450 = vpop.f32.mrf.mxu0
      %v451 = vadd.f32 %v278, %v450
      %v452 = vpop.f32.mrf.mxu0
      %v453 = vadd.f32 %v278, %v452
      %v454 = vpop.f32.mrf.mxu0
      %v455 = vadd.f32 %v283, %v454
      %v456 = vpop.f32.mrf.mxu0
      %v457 = vadd.f32 %v283, %v456
      %458 = vmatprep.mubr.bf16.mxu0 0
      %459 = vmatmul.mubr.bf16.gmra.mxu0 %v381
      %v460 = vpop.f32.mrf.mxu0
      %v461 = vadd.f32 %v288, %v460
      %v462 = vpop.f32.mrf.mxu0
      %v463 = vadd.f32 %v288, %v462
      %v464 = vpop.f32.mrf.mxu0
      %v465 = vadd.f32 %v293, %v464
      %v466 = vpop.f32.mrf.mxu0
      %v467 = vadd.f32 %v293, %v466
      %468 = vmatprep.mubr.bf16.mxu0 0
      %469 = vmatmul.mubr.bf16.gmra.mxu0 %v384
      %v470 = vpop.f32.mrf.mxu0
      %v471 = vadd.f32 %v298, %v470
      %v472 = vpop.f32.mrf.mxu0
      %v473 = vadd.f32 %v298, %v472
      %v474 = vpop.f32.mrf.mxu0
      %v475 = vadd.f32 %v303, %v474
      %v476 = vpop.f32.mrf.mxu0
      %v477 = vadd.f32 %v303, %v476
      %478 = vmatprep.mubr.bf16.mxu0 0
      %479 = vmatmul.mubr.bf16.gmra.mxu0 %v387
      %v480 = vpop.f32.mrf.mxu0
      %v481 = vadd.f32 %v308, %v480
      %v482 = vpop.f32.mrf.mxu0
      %v483 = vadd.f32 %v308, %v482
      %v484 = vpop.f32.mrf.mxu0
      %v485 = vadd.f32 %v313, %v484
      %v486 = vpop.f32.mrf.mxu0
      %v487 = vadd.f32 %v313, %v486
      %488 = vdwg.mxu0
      %v489 = vmax.f32 %v431, 0.0
      %v490 = vmax.f32 %v433, 0.0
      %v491 = vmax.f32 %v435, 0.0
      %v492 = vmax.f32 %v437, 0.0
      %v493 = vmax.f32 %v441, 0.0
      %v494 = vmax.f32 %v443, 0.0
      %v495 = vmax.f32 %v445, 0.0
      %v496 = vmax.f32 %v447, 0.0
      %v497 = vmax.f32 %v451, 0.0
      %v498 = vmax.f32 %v453, 0.0
      %v499 = vmax.f32 %v455, 0.0
      %v500 = vmax.f32 %v457, 0.0
      %v501 = vmax.f32 %v461, 0.0
      %v502 = vmax.f32 %v463, 0.0
      %v503 = vmax.f32 %v465, 0.0
      %v504 = vmax.f32 %v467, 0.0
      %v505 = vmax.f32 %v471, 0.0
      %v506 = vmax.f32 %v473, 0.0
      %v507 = vmax.f32 %v475, 0.0
      %v508 = vmax.f32 %v477, 0.0
      %v509 = vmax.f32 %v481, 0.0
      %v510 = vmax.f32 %v483, 0.0
      %v511 = vmax.f32 %v485, 0.0
      %v512 = vmax.f32 %v487, 0.0
      %v513 = vld [vmem:[%s3] sm:$0x3]
      %v514 = vpack.c.bf16 %v491, %v489
      %v515 = vpack.c.bf16 %v492, %v490
      %v516 = vpack.c.bf16 %v495, %v493
      %v517 = vpack.c.bf16 %v496, %v494
      %v518 = vpack.c.bf16 %v499, %v497
      %v519 = vpack.c.bf16 %v500, %v498
      %v520 = vpack.c.bf16 %v503, %v501
      %v521 = vpack.c.bf16 %v504, %v502
      %v522 = vpack.c.bf16 %v507, %v505
      %v523 = vpack.c.bf16 %v508, %v506
      %v524 = vpack.c.bf16 %v511, %v509
      %v525 = vpack.c.bf16 %v512, %v510
      %v526 = vld [vmem:[%s4] sm:$0xf]
      %528 = vset.pattern.permute.xlu0 0
      %529 = vperm.xlu0 %528, %v526
      %v530 = vpop.permute.xlu0 %529
      %vm532 = vcmask 785408
      %v534 = vsel %vm532, %v513, 0
      %536 = vmatprep.subr.bf16.mxu0 0
      %537 = vmatpush1.bf16.msra.mxu0 0
      %538 = vmatprep.subr.bf16.mxu0 0
      %539 = vmatpush1.bf16.msra.mxu0 0
      %540 = vmatprep.subr.bf16.mxu0 %v525
      %541 = vmatpush1.bf16.msra.mxu0 %v524
      %542 = vmatprep.subr.bf16.mxu0 %v523
      %543 = vmatpush1.bf16.msra.mxu0 %v522
      %544 = vmatprep.subr.bf16.mxu0 %v521
      %545 = vmatpush1.bf16.msra.mxu0 %v520
      %546 = vmatprep.subr.bf16.mxu0 %v519
      %547 = vmatpush1.bf16.msra.mxu0 %v518
      %548 = vmatprep.subr.bf16.mxu0 %v517
      %549 = vmatpush1.bf16.msra.mxu0 %v516
      %550 = vmatprep.subr.bf16.mxu0 %v515
      %551 = vmatpush1.bf16.msra.mxu0 %v514
      %552 = vmatprep.subr.bf16.mxu0 0
      %553 = vmatpush2.bf16.msra.mxu0 0
      %554 = vmatprep.subr.bf16.mxu0 0
      %555 = vmatpush2.bf16.msra.mxu0 0
      %556 = vmatprep.subr.bf16.mxu0 0
      %557 = vmatpush2.bf16.msra.mxu0 0
      %558 = vmatprep.subr.bf16.mxu0 0
      %559 = vmatpush2.bf16.msra.mxu0 0
      %560 = vmatprep.subr.bf16.mxu0 0
      %561 = vmatpush2.bf16.msra.mxu0 0
      %562 = vmatprep.subr.bf16.mxu0 0
      %563 = vmatpush2.bf16.msra.mxu0 0
      %564 = vmatprep.subr.bf16.mxu0 0
      %565 = vmatpush2.bf16.msra.mxu0 0
      %566 = vmatprep.subr.bf16.mxu0 0
      %567 = vmatpush2.bf16.msra.mxu0 0
      %568 = vmatprep.mubr.bf16.mxu0 0
      %569 = vmatmul.mubr.bf16.gmra.mxu0 %v534
      %v570 = vpop.f32.mrf.mxu0
      %v571 = vadd.f32 %v530, %v570
      %v572 = vpop.f32.mrf.mxu0
      %v573 = vadd.f32 %v530, %v572
      %v574 = vpop.f32.mrf.mxu0
      %v575 = vpop.f32.mrf.mxu0
      %576 = vdwg.mxu0
      %v579 = vcombine.low %v571, %v573
      %581 = vst [vmem:[%s224] sm:$0xff] %v579
      %p582 = scmp.lt.s32.totalorder %s16, 1
      %s583 = scalar_select %p582, %s16, 1
      %s584 = smul.addr %s583, 2
      %s585 = smul.addr %s584, 4
      %s586 = scalar_lea.vmem %s5, %s585
      // Predicated region
      $region41: #{msnet_forward.1} parent=39 // pred_check
        %p587 = pneg %p144
      $region42: #{msnet_forward.1} parent=39 // pred_check_branch
        %589 = sbr.rel (%p587) target = $region44
      $region43: #{msnet_forward.1} parent=39 // pred_region
        _
      $region44: #{msnet_forward.1} parent=39 // pred_fallthru
        _
    $region40: #{msnet_forward.1} parent=5 // pred_fallthru
      _
    %p590 = scmp.le.s32.totalorder 2, %s11
    // Predicated region
    $region45: #{msnet_forward.1} parent=5 // pred_check
      %p591 = pneg %p590
    $region46: #{msnet_forward.1} parent=5 // pred_check_branch
      %593 = sbr.rel (%p591) target = $region48
    $region47: #{msnet_forward.1} parent=5 // pred_region
      %s594 = ssub.s32 %s11, 2
      // Predicated region
      $region49: #{msnet_forward.1} parent=47 // pred_check
        %p595 = pneg %p150
      $region50: #{msnet_forward.1} parent=47 // pred_check_branch
        %597 = sbr.rel (%p595) target = $region52
      $region51: #{msnet_forward.1} parent=47 // pred_region
        %p598 = scmp.lt.s32.totalorder %s17, 1
        %s599 = scalar_select %p598, %s17, 1
        %s600 = smul.addr %s599, 2
        %s601 = smul.addr %s600, 4
        %s602 = scalar_lea.vmem %s5, %s601
      $region52: #{msnet_forward.1} parent=47 // pred_fallthru
        _
    $region48: #{msnet_forward.1} parent=5 // pred_fallthru
      _
  $region6: #{msnet_forward.1} parent=0 // loop_footer
    %s15 = sadd.s32 1, %s11
  $region7: #{msnet_forward.1} parent=0 // loop_footer_branch
    %10 = sbr.rel target = $region3
  $region8: #{msnet_forward.1} parent=0 // loop_exit
    _

</llo_original>
